<compile_context>
chip_gen: v7x
topology: tpu7x:2x2x1
jax: 0.10.0
libtpu: 0.0.40
codegen_flags: <defaults>
</compile_context>

<pallas_src>
import jax
import jax.numpy as jnp
from jax.experimental import pallas as pl
from jax.experimental.pallas import tpu as pltpu


def _round_up(x, m):
    return ((x + m - 1) // m) * m


# ---------------------------------------------------------------------------
# Prologue: y = x @ W + b, computed ONCE per input (tiny: N * d_h elements).
# ---------------------------------------------------------------------------
def _linear_kernel(x_ref, w_ref, b_ref, o_ref):
    y = jnp.dot(x_ref[...], w_ref[...],
                preferred_element_type=jnp.float32) + b_ref[...]
    o_ref[...] = y.astype(o_ref.dtype)


def _linear_proj(x_padded, w_bf16, b_f32, *, tn):
    """x_padded: (N_pad, d_in) bf16, tn must divide N_pad. Returns (N_pad, d_h) bf16."""
    n_p, d_in = x_padded.shape
    d_h = w_bf16.shape[1]
    return pl.pallas_call(
        _linear_kernel,
        out_shape=jax.ShapeDtypeStruct((n_p, d_h), jnp.bfloat16),
        grid_spec=pltpu.PrefetchScalarGridSpec(
            num_scalar_prefetch=0,
            grid=(n_p // tn,),
            in_specs=[
                pl.BlockSpec((tn, d_in), lambda i: (i, 0)),    # row tile
                pl.BlockSpec((d_in, d_h), lambda i: (0, 0)),   # W (VMEM-resident)
                pl.BlockSpec((1, d_h), lambda i: (0, 0)),      # b (VMEM-resident)
            ],
            out_specs=pl.BlockSpec((tn, d_h), lambda i: (i, 0)),
        ),
        compiler_params=pltpu.CompilerParams(
            dimension_semantics=("parallel",),
        ),
    )(x_padded, w_bf16, b_f32)


# ---------------------------------------------------------------------------
# Main kernel: one (tq, tk) output tile of sigmoid(Q_proj @ K_proj^T).
# ---------------------------------------------------------------------------
def _score_kernel(qp_ref, kpt_ref, o_ref):
    # Canonical (M,K)x(K,N) MXU matmul, f32 accumulation.
    s = jnp.dot(qp_ref[...], kpt_ref[...], preferred_element_type=jnp.float32)
    # sigmoid(x) == 0.5*tanh(0.5*x) + 0.5 : a single EUP transcendental per
    # element (vs exp + reciprocal), f32 throughout.
    o_ref[...] = (0.5 * jnp.tanh(0.5 * s) + 0.5).astype(o_ref.dtype)


def attention_score(q, k, wq, bq, wk, bk, *, tq=512, tk=2048,
                    out_dtype=jnp.float32):
    """q: (Nq, D_in), k: (Nk, D_in), wq/wk: (D_in, D_h), bq/bk: (1, D_h) or (D_h,).

    Returns sigmoid(sum_h Q_h K_h^T) of shape (Nq, Nk) in `out_dtype`.
    """
    nq, d_in = q.shape
    nk, _ = k.shape
    d_h = wq.shape[1]

    # Row tile multiple of 8 (sublanes); column tile multiple of 128
    # (lane-dense unmasked output stores); clamp to the (padded) problem size.
    tq = min(tq, _round_up(nq, 8))
    tk = min(tk, _round_up(nk, 128))
    nq_p = _round_up(nq, tq)
    nk_p = _round_up(nk, tk)

    # Zero-pad sequence axes; padded rows/cols only affect output entries
    # that are sliced off below (each score (i, j) depends only on q[i], k[j]).
    q_p = jnp.pad(q, ((0, nq_p - nq), (0, 0))).astype(jnp.bfloat16)
    k_p = jnp.pad(k, ((0, nk_p - nk), (0, 0))).astype(jnp.bfloat16)
    wq_b = wq.astype(jnp.bfloat16)
    wk_b = wk.astype(jnp.bfloat16)
    bq2 = jnp.asarray(bq).reshape(1, d_h).astype(jnp.float32)
    bk2 = jnp.asarray(bk).reshape(1, d_h).astype(jnp.float32)

    # Prologue row tiles.  These always divide the padded lengths:
    #  - if N_pad <= 2048 we use the whole (small) array as one block;
    #  - if N_pad > 2048 then the score tile hit its default (512 / 2048),
    #    so N_pad is a multiple of that default, hence a multiple of 512.
    ptq = nq_p if nq_p <= 2048 else 512
    ptk = nk_p if nk_p <= 2048 else 512

    q_proj = _linear_proj(q_p, wq_b, bq2, tn=ptq)   # (nq_p, d_h) bf16
    k_proj = _linear_proj(k_p, wk_b, bk2, tn=ptk)   # (nk_p, d_h) bf16
    # Tiny (Nk*d_h) transpose so the score matmul consumes a lane-dense
    # (d_h, tk) tile and needs no in-kernel transpose.
    k_projT = k_proj.T                              # (d_h, nk_p) bf16

    grid = (nq_p // tq, nk_p // tk)

    out = pl.pallas_call(
        _score_kernel,
        out_shape=jax.ShapeDtypeStruct((nq_p, nk_p), out_dtype),
        grid_spec=pltpu.PrefetchScalarGridSpec(
            num_scalar_prefetch=0,
            grid=grid,
            in_specs=[
                pl.BlockSpec((tq, d_h), lambda i, j: (i, 0)),   # Q_proj row tile
                pl.BlockSpec((d_h, tk), lambda i, j: (0, j)),   # K_proj^T col tile
            ],
            out_specs=pl.BlockSpec((tq, tk), lambda i, j: (i, j)),
        ),
        compiler_params=pltpu.CompilerParams(
            # No carried state -> both axes fully parallel (v7x megacore).
            dimension_semantics=("parallel", "parallel"),
            # 2 x (512*2048*4B) out tiles + input tiles ~ 9 MiB at the default
            # tile sizes; 32 MiB keeps headroom on v5e (16 MiB default scoped
            # limit) and stays well inside v7x's 64 MiB physical VMEM.
            vmem_limit_bytes=32 * 1024 * 1024,
        ),
    )(q_proj, k_projT)

    # Avoid re-streaming the dominant Nq x Nk array when no padding occurred.
    if nq_p == nq and nk_p == nk:
        return out
    return out[:nq, :nk]


def reference(q, k, wq, bq, wk, bk):
    q_proj = q @ wq + bq
    k_proj = k @ wk + bk
    return jax.nn.sigmoid(q_proj @ k_proj.T)


if __name__ == "__main__":
    # Module config (head=1 so hidden_dims % head == 0).
    input_dims = 32
    hidden_dims = 32
    seq_q = 8
    seq_k = 8
    # NOTE: at this toy size the call is dominated by fixed per-step overhead;
    # real workloads should use large N so the (512, 2048) tiles engage.

    key = jax.random.PRNGKey(0)
    kq, kk, kwq, kbq, kwk, kbk = jax.random.split(key, 6)

    # Inputs.
    q = jax.random.normal(kq, (seq_q, input_dims), dtype=jnp.float32)
    k = jax.random.normal(kk, (seq_k, input_dims), dtype=jnp.float32)

    # Deterministic "Linear" parameters (PyTorch weight (H, D_in) stored
    # pre-transposed as (D_in, H); bias kept 2-D (1, H) for TPU layout).
    scale = 1.0 / jnp.sqrt(jnp.float32(input_dims))
    wq = jax.random.uniform(kwq, (input_dims, hidden_dims),
                            minval=-scale, maxval=scale, dtype=jnp.float32)
    bq = jax.random.uniform(kbq, (1, hidden_dims),
                            minval=-scale, maxval=scale, dtype=jnp.float32)
    wk = jax.random.uniform(kwk, (input_dims, hidden_dims),
                            minval=-scale, maxval=scale, dtype=jnp.float32)
    bk = jax.random.uniform(kbk, (1, hidden_dims),
                            minval=-scale, maxval=scale, dtype=jnp.float32)

    out = attention_score(q, k, wq, bq, wk, bk)
    jax.block_until_ready(out)

    ref = reference(q, k, wq, bq, wk, bk)
    assert out.shape == (seq_q, seq_k)
    # bf16 MXU operands (f32 accumulation) -> looser tolerance than pure f32.
    err = float(jnp.max(jnp.abs(out - ref)))
    assert err < 5e-2, err

    print("KERNEL_OK")
</pallas_src>

<mosaic_0001>
module attributes {stable_mosaic.version = 11 : i64} {
  func.func @_linear_kernel(%arg0: i32, %arg1: memref<8x32xbf16, #tpu.memory_space<vmem>>, %arg2: memref<32x32xbf16, #tpu.memory_space<vmem>>, %arg3: memref<1x32xf32, #tpu.memory_space<vmem>>, %arg4: memref<8x32xbf16, #tpu.memory_space<vmem>>) attributes {dimension_semantics = [#tpu.dimension_semantics<parallel>], iteration_bounds = array<i64: 1>, scalar_prefetch = 0 : i64, scratch_operands = 0 : i64, tpu.core_type = #tpu.core_type<tc>, window_params = [{transform_indices = @transform_0, window_bounds = array<i64: 8, 32>}, {pipeline_mode = #tpu.pipeline_mode<synchronous>, transform_indices = @transform_1, window_bounds = array<i64: 32, 32>}, {pipeline_mode = #tpu.pipeline_mode<synchronous>, transform_indices = @transform_2, window_bounds = array<i64: 1, 32>}, {transform_indices = @transform_3, window_bounds = array<i64: 8, 32>}]} {
    %c0 = arith.constant 0 : index
    %c0_0 = arith.constant 0 : index
    %0 = vector.load %arg1[%c0, %c0_0] : memref<8x32xbf16, #tpu.memory_space<vmem>>, vector<8x32xbf16>
    %c0_1 = arith.constant 0 : index
    %c0_2 = arith.constant 0 : index
    %1 = vector.load %arg2[%c0_1, %c0_2] : memref<32x32xbf16, #tpu.memory_space<vmem>>, vector<32x32xbf16>
    %cst = arith.constant dense<0.000000e+00> : vector<8x32xf32>
    %2 = tpu.matmul %0, %1, %cst {dimension_numbers = #tpu.dot_dimension_numbers<[1], [0], [0], [1], [0, 0, 1, 1], [], []>} : vector<8x32xbf16>, vector<32x32xbf16>, vector<8x32xf32> -> vector<8x32xf32>
    %c0_3 = arith.constant 0 : index
    %c0_4 = arith.constant 0 : index
    %3 = vector.load %arg3[%c0_3, %c0_4] : memref<1x32xf32, #tpu.memory_space<vmem>>, vector<1x32xf32>
    %4 = vector.broadcast %3 : vector<1x32xf32> to vector<8x32xf32>
    %5 = arith.addf %2, %4 : vector<8x32xf32>
    %6 = arith.truncf %5 : vector<8x32xf32> to vector<8x32xbf16>
    %c0_5 = arith.constant 0 : index
    %c0_6 = arith.constant 0 : index
    %7 = vector.load %arg4[%c0_5, %c0_6] : memref<8x32xbf16, #tpu.memory_space<vmem>>, vector<8x32xbf16>
    tpu.vector_store %arg4[%c0_5, %c0_6], %6 {strides = array<i32>} : memref<8x32xbf16, #tpu.memory_space<vmem>>, vector<8x32xbf16>,
    return
  }
  func.func @transform_0(%arg0: i32) -> (i32, i32) {
    %c0_i32 = arith.constant 0 : i32
    %c0_i32_0 = arith.constant 0 : i32
    return %arg0, %c0_i32 : i32, i32
  }
  func.func @transform_1(%arg0: i32) -> (i32, i32) {
    %c0_i32 = arith.constant 0 : i32
    %c0_i32_0 = arith.constant 0 : i32
    %c0_i32_1 = arith.constant 0 : i32
    return %c0_i32, %c0_i32_0 : i32, i32
  }
  func.func @transform_2(%arg0: i32) -> (i32, i32) {
    %c0_i32 = arith.constant 0 : i32
    %c0_i32_0 = arith.constant 0 : i32
    %c0_i32_1 = arith.constant 0 : i32
    return %c0_i32, %c0_i32_0 : i32, i32
  }
  func.func @transform_3(%arg0: i32) -> (i32, i32) {
    %c0_i32 = arith.constant 0 : i32
    %c0_i32_0 = arith.constant 0 : i32
    return %arg0, %c0_i32 : i32, i32
  }
}

</mosaic_0001>

<llo_original>
// kernel: tpu_custom_call.1
$region0: #{tpu_custom_call.1}
  #allocation0 [shape = 'u32[]', space=smem, size = 0x4, offset = 0x4, fixed_abs, tag = 'smem constant byte address 0x4 - core index']
  #allocation1 [shape = 'u32[144,128]{1,0:T(1,128)}', space=vmem, size = 0x12000, scoped, tag = 'internal scratch']
  %s0 = inlined_call_operand.hbm [shape: bf16[8,32], index: 0, kind: input, shape index: {}]
  %s1 = inlined_call_operand.hbm [shape: bf16[32,32], index: 1, kind: input, shape index: {}]
  %s2 = inlined_call_operand.vmem [shape: f32[1,32], index: 2, kind: input, shape index: {}]
  %s3 = inlined_call_operand.hbm [shape: bf16[8,32], index: 3, kind: output, shape index: {}]
  %s4 = sld [smem:[#allocation0]]
  $region30: #{tpu_custom_call.1} parent=0
    _
  %s6 = ssub.s32 1, %s4
  %s7 = scalar_select 0, %s6, %s4
  $region1: #{tpu_custom_call.1} parent=0
    #allocation2 [shape = 'u8[2048]{0}', space=vmem, size = 0x800, scoped, tag = 'input window, operand 0, single buffered']
    #allocation3 [shape = 's32[1]{0}', space=sflag, size = 0x4, scoped, tag = 'scoped memory for tpu_custom_call.1']
    #allocation4 [shape = 's32[1]{0}', space=sflag, size = 0x4, scoped, tag = 'scoped memory for tpu_custom_call.1']
    #allocation5 [shape = 'u8[8192]{0}', space=vmem, size = 0x2000, scoped, tag = 'input window, operand 1, single buffered']
    #allocation6 [shape = 's32[1]{0}', space=sflag, size = 0x4, scoped, tag = 'scoped memory for tpu_custom_call.1']
    #allocation7 [shape = 'u8[2048]{0}', space=vmem, size = 0x800, scoped, tag = 'output window, operand 0, single buffered']
    %8 = vsyncpa [#allocation3], 0
    %9 = vsyncpa [#allocation6], 0
    %10 = vsyncpa [#allocation4], 0
    // Predicated region
    $region2: #{tpu_custom_call.1} parent=1 // pred_check
      _
    $region3: #{tpu_custom_call.1} parent=1 // pred_check_branch
      %12 = sbr.rel (0) target = $region5
    $region4: #{tpu_custom_call.1} parent=1 // pred_region
      %s14 = ssub.s32 64, 64
      %15 = vsyncadd [#allocation3], %s14
      %s17 = sshll.u32 [#allocation2], 4
      %s18 = int_to_ptr.vmem [resolvable:$true] %s17
      %20 = dma.hbm_to_vmem [thread:$0]  %s0, 64, %s18, [#allocation3]
    $region5: #{tpu_custom_call.1} parent=1 // pred_fallthru
      _
    // Predicated region
    $region6: #{tpu_custom_call.1} parent=1 // pred_check
      _
    $region7: #{tpu_custom_call.1} parent=1 // pred_check_branch
      %22 = sbr.rel (0) target = $region9
    $region8: #{tpu_custom_call.1} parent=1 // pred_region
      %s24 = ssub.s32 256, 256
      %25 = vsyncadd [#allocation6], %s24
      %s26 = sshll.u32 [#allocation5], 4
      %s27 = int_to_ptr.vmem [resolvable:$true] %s26
      %32 = dma.hbm_to_vmem [thread:$0]  %s1, 256, %s27, [#allocation6], 64, 64, 4
    $region9: #{tpu_custom_call.1} parent=1 // pred_fallthru
      _
    // Predicated region
    $region10: #{tpu_custom_call.1} parent=1 // pred_check
      _
    $region11: #{tpu_custom_call.1} parent=1 // pred_check_branch
      %34 = sbr.rel (0) target = $region13
    $region12: #{tpu_custom_call.1} parent=1 // pred_region
      _
    $region13: #{tpu_custom_call.1} parent=1 // pred_fallthru
      _
    // Predicated region
    $region14: #{tpu_custom_call.1} parent=1 // pred_check
      _
    $region15: #{tpu_custom_call.1} parent=1 // pred_check_branch
      %36 = sbr.rel (0) target = $region17
    $region16: #{tpu_custom_call.1} parent=1 // pred_region
      %37 = dma.done [#allocation3], 64
    $region17: #{tpu_custom_call.1} parent=1 // pred_fallthru
      _
    // Predicated region
    $region18: #{tpu_custom_call.1} parent=1 // pred_check
      _
    $region19: #{tpu_custom_call.1} parent=1 // pred_check_branch
      %39 = sbr.rel (0) target = $region21
    $region20: #{tpu_custom_call.1} parent=1 // pred_region
      %40 = dma.done [#allocation6], 256
    $region21: #{tpu_custom_call.1} parent=1 // pred_fallthru
      _
    %v42 = vld [vmem:[#allocation2] sm:$0xf]
    %v43 = vld [vmem:[#allocation5] sm:$0xf]
    %v44 = vld [vmem:[#allocation5 + $0x4] sm:$0xf]
    %v45 = vld [vmem:[#allocation5 + $0x8] sm:$0xf]
    %v46 = vld [vmem:[#allocation5 + $0xc] sm:$0xf]
    %v47 = vld [vmem:[%s2] sm:$0x1]
    %v49 = vlaneseq
    %v50 = vshrl.u32 %v49, 7
    %v51 = vsub.s32 0, %v50
    %v52 = vrot.slane %v47, %v51
    %v58 = vunpack.c.l.b16 %v43
    %v59 = vunpack.c.l.b16 %v44
    %v60 = vunpack.c.l.b16 %v45
    %v61 = vunpack.c.l.b16 %v46
    %v62 = vpack.c.b16 %v59, %v58
    %v63 = vpack.c.b16 %v61, %v60
    %vm66 = vcmask 261120
    %v68 = vsel %vm66, %v42, 0
    %70 = vmatprep.subr.bf16.mxu0 0
    %71 = vmatpush1.bf16.msra.mxu0 %v62
    %72 = vmatprep.subr.bf16.mxu0 0
    %73 = vmatpush1.bf16.msra.mxu0 %v63
    %74 = vmatprep.subr.bf16.mxu0 0
    %75 = vmatpush1.bf16.msra.mxu0 0
    %76 = vmatprep.subr.bf16.mxu0 0
    %77 = vmatpush1.bf16.msra.mxu0 0
    %78 = vmatprep.subr.bf16.mxu0 0
    %79 = vmatpush1.bf16.msra.mxu0 0
    %80 = vmatprep.subr.bf16.mxu0 0
    %81 = vmatpush1.bf16.msra.mxu0 0
    %82 = vmatprep.subr.bf16.mxu0 0
    %83 = vmatpush1.bf16.msra.mxu0 0
    %84 = vmatprep.subr.bf16.mxu0 0
    %85 = vmatpush1.bf16.msra.mxu0 0
    %86 = vmatprep.subr.bf16.mxu0 0
    %87 = vmatpush1.bf16.msra.mxu0 0
    %88 = vmatprep.subr.bf16.mxu0 0
    %89 = vmatpush1.bf16.msra.mxu0 0
    %90 = vmatprep.subr.bf16.mxu0 0
    %91 = vmatpush1.bf16.msra.mxu0 0
    %92 = vmatprep.subr.bf16.mxu0 0
    %93 = vmatpush1.bf16.msra.mxu0 0
    %94 = vmatprep.subr.bf16.mxu0 0
    %95 = vmatpush1.bf16.msra.mxu0 0
    %96 = vmatprep.subr.bf16.mxu0 0
    %97 = vmatpush1.bf16.msra.mxu0 0
    %98 = vmatprep.subr.bf16.mxu0 0
    %99 = vmatpush1.bf16.msra.mxu0 0
    %100 = vmatprep.subr.bf16.mxu0 0
    %101 = vmatpush1.bf16.msra.mxu0 0
    %102 = vmatprep.mubr.bf16.mxu0 0
    %103 = vmatmul.mubr.bf16.gmra.mrb[0].mxu0 %v68
    %v104 = vpop.f32.mrb[0].mxu0
    %v105 = vadd.f32 %v52, %v104
    %v106 = vpop.f32.mrb[0].mxu0
    %v107 = vpop.f32.mrb[0].mxu0
    %v108 = vpop.f32.mrb[0].mxu0
    %109 = vdwg.mxu0
    %v110 = vpack.c.bf16 %v105, %v105
    %vm111 = vcmask 257024
    %112 = vst.msk [vmem:[#allocation7] sm:$0xf] %vm111, %v110
    // Predicated region
    $region22: #{tpu_custom_call.1} parent=1 // pred_check
      _
    $region23: #{tpu_custom_call.1} parent=1 // pred_check_branch
      %114 = sbr.rel (0) target = $region25
    $region24: #{tpu_custom_call.1} parent=1 // pred_region
      %s116 = ssub.s32 64, 64
      %117 = vsyncadd [#allocation4], %s116
      %s119 = sshll.u32 [#allocation7], 4
      %s120 = int_to_ptr.vmem [resolvable:$true] %s119
      %122 = dma.vmem_to_hbm [thread:$0]  %s120, 64, %s3, [#allocation4]
    $region25: #{tpu_custom_call.1} parent=1 // pred_fallthru
      _
    // Predicated region
    $region26: #{tpu_custom_call.1} parent=1 // pred_check
      _
    $region27: #{tpu_custom_call.1} parent=1 // pred_check_branch
      %124 = sbr.rel (0) target = $region29
    $region28: #{tpu_custom_call.1} parent=1 // pred_region
      %125 = dma.done [#allocation4], 64
    $region29: #{tpu_custom_call.1} parent=1 // pred_fallthru
      _
    %126 = vsyncpa [#allocation3], 1
    %127 = vsyncpa [#allocation6], 1
    %128 = vsyncpa [#allocation4], 1

</llo_original>
